<compile_context>
chip_gen: v6e
topology: v6e:2x2x1
jax: 0.10.0
libtpu: 0.0.40
codegen_flags: <defaults>
</compile_context>

<pallas_src>
import functools
import numpy as np
import jax
import jax.numpy as jnp
from jax import lax
from jax.experimental import pallas as pl
from jax.experimental.pallas import tpu as pltpu


# ----------------------------------------------------------------------------
# Config mirroring netParams / trainParams of the PyTorch module
# ----------------------------------------------------------------------------
NEURONS = (16, 32, 32, 8)          # netParams['neurons']  (in, hidden..., out)
ACTS = ("relu", "relu")            # netParams['act'] (one per hidden layer)
MU = 0.5                           # netParams['mu']
STD = 2.0                          # netParams['std']


def _apply_act(name, x):
    if name == "relu":
        return jnp.maximum(x, 0.0)
    if name == "tanh":
        return jnp.tanh(x)
    if name == "sigmoid":
        return jax.nn.sigmoid(x)
    # TODO(synk): other torch activation strings from netParams['act'] not mapped
    raise ValueError(f"unsupported activation: {name}")


def _mlp_kernel(x_ref, *refs, n_hidden, acts):
    """refs = (wT1, b1, wT2, b2, ..., wT_out, b_out, oT).

    Layout:
      x_ref : (TB, in_dim)      -- natural batch-major HBM layout, contiguous DMA
      wTi   : (fan_out, fan_in) -- VMEM-resident across the whole grid
      bi    : (fan_out, 1)      -- broadcasts along the lane (batch) axis
      oT    : (out_dim, TB)     -- feature-major, lane-dense output store
    Preprocess (x - mu)/std is already folded into (wT1, b1) by the wrapper.
    """
    o_ref = refs[-1]
    p = refs[:-1]

    x = x_ref[...]                                   # (TB, in_dim)
    wT1, b1 = p[0][...], p[1][...]
    # Contract the feature axes of both operands -> feature-major (h1, TB);
    # batch stays on the 128-lane axis for all subsequent layers.
    h = lax.dot_general(
        wT1, x, (((1,), (1,)), ((), ())), preferred_element_type=jnp.float32
    ) + b1
    h = _apply_act(acts[0], h)

    for i in range(1, n_hidden):
        wT, b = p[2 * i][...], p[2 * i + 1][...]
        h = jnp.dot(wT, h, preferred_element_type=jnp.float32) + b
        h = _apply_act(acts[i], h)

    wT_out, b_out = p[2 * n_hidden][...], p[2 * n_hidden + 1][...]
    o_ref[...] = (
        jnp.dot(wT_out, h, preferred_element_type=jnp.float32) + b_out
    ).astype(o_ref.dtype)


def init_params(key, neurons):
    """Deterministic init matching the PyTorch module's init scheme.

    Hidden layers: uniform(-1/sqrt(fan_in), 1/sqrt(fan_in)) for W and b.
    Output layer:  uniform(-0.003, 0.003).
    Weights stored as (fan_in, fan_out); biases as (1, fan_out).
    """
    params = []
    for fan_in, fan_out in zip(neurons[:-2], neurons[1:-1]):
        bound = 1.0 / np.sqrt(fan_in)
        key, kw, kb = jax.random.split(key, 3)
        w = jax.random.uniform(kw, (fan_in, fan_out), jnp.float32, -bound, bound)
        b = jax.random.uniform(kb, (1, fan_out), jnp.float32, -bound, bound)
        params += [w, b]
    fan_in, fan_out = neurons[-2], neurons[-1]
    key, kw, kb = jax.random.split(key, 3)
    w = jax.random.uniform(kw, (fan_in, fan_out), jnp.float32, -0.003, 0.003)
    b = jax.random.uniform(kb, (1, fan_out), jnp.float32, -0.003, 0.003)
    params += [w, b]
    return params


def prepare_kernel_params(params, mu, std):
    """One-time prep (call at init / after each optimizer step, NOT per forward).

    Folds the scalar (x - mu)/std preprocess into layer 1 exactly and
    transposes everything into the feature-major kernel layout.
    NOTE: assumes scalar mu/std (as in netParams here); per-feature vectors
    would need b1f = b1 - (mu/std) @ w1 instead.
    """
    w1, b1 = params[0], params[1]                     # (in, h1), (1, h1)
    w1f = w1 / std
    b1f = b1 - (mu / std) * jnp.sum(w1, axis=0, keepdims=True)
    folded = [w1f, b1f] + list(params[2:])

    kparams = []
    for i in range(len(folded) // 2):
        w, b = folded[2 * i], folded[2 * i + 1]
        kparams.append(jnp.transpose(w))              # (fan_out, fan_in)
        kparams.append(jnp.reshape(b, (-1, 1)))       # (fan_out, 1)
    return tuple(kparams)


def _choose_tb(batch, *, align=256, max_tb=4096):
    """Static batch-tile choice.

    - batch <= 2*align: a single full-extent tile (block dim == array dim keeps
      the (8,128) rule satisfied with zero padding traffic).
    - larger: 256-aligned tiles (v6e/v7x MXU column width), sized so the grid
      has >= 2 steps (v7x dual-TC sharding via "parallel"), capped at max_tb.
      VMEM is a non-issue: x block = 16*4096*4 B = 256 KiB double-buffered.
    """
    if batch <= 2 * align:
        return batch
    half = -(-batch // 2)
    tb = -(-half // align) * align
    return min(tb, max_tb)


@functools.partial(jax.jit, static_argnames=("neurons", "acts"))
def network_forward(x, kparams, *, neurons, acts):
    """Forward pass matching Network.forward.  x: (batch, in_dim) f32."""
    batch = x.shape[0]
    in_dim = neurons[0]
    out_dim = neurons[-1]
    n_hidden = len(neurons) - 2

    tb = _choose_tb(batch)
    num_tiles = pl.cdiv(batch, tb)

    # x streamed in natural layout; boundary block (if any) is masked by Pallas.
    x_spec = pl.BlockSpec((tb, in_dim), lambda i: (i, 0))
    # Feature-major output: batch on the lane axis -> lane-dense stores.
    o_spec = pl.BlockSpec((out_dim, tb), lambda i: (0, i))
    # Whole-array blocks with constant block index -> weights stay VMEM-resident.
    w_specs = [pl.BlockSpec(p.shape, lambda i: (0, 0)) for p in kparams]
    # TODO(synk): if profiling shows exposed DMA on the x stream, add
    # pipeline_mode=pl.Buffered(3) to x_spec (still tiny VMEM).

    flops = 2 * batch * sum(a * b for a, b in zip(neurons[:-1], neurons[1:]))
    bytes_accessed = 4 * (x.size + batch * out_dim + sum(p.size for p in kparams))

    kernel = functools.partial(_mlp_kernel, n_hidden=n_hidden, acts=acts)

    outT = pl.pallas_call(
        kernel,
        out_shape=jax.ShapeDtypeStruct((out_dim, batch), jnp.float32),
        grid=(num_tiles,),
        in_specs=[x_spec] + w_specs,
        out_specs=o_spec,
        compiler_params=pltpu.CompilerParams(
            dimension_semantics=("parallel",),
            vmem_limit_bytes=32 * 1024 * 1024,
        ),
        cost_estimate=pl.CostEstimate(
            flops=flops, transcendentals=0, bytes_accessed=bytes_accessed
        ),
    )(x, *kparams)

    # Module semantics: (batch, out_dim).  out_dim=8, so this transpose is a
    # small pass; layout-agnostic consumers could take outT directly.
    return jnp.transpose(outT)


def reference_forward(x, params, neurons, acts, mu, std):
    """Plain-JAX reference matching the PyTorch forward semantics."""
    n_hidden = len(neurons) - 2
    h = (x - mu) / std
    for i in range(n_hidden):
        w, b = params[2 * i], params[2 * i + 1]
        h = _apply_act(acts[i], h @ w + b)
    w, b = params[2 * n_hidden], params[2 * n_hidden + 1]
    return h @ w + b


if __name__ == "__main__":
    key = jax.random.PRNGKey(0)
    key, kp, kx1, kx2, kx3 = jax.random.split(key, 5)

    params = init_params(kp, NEURONS)
    kparams = prepare_kernel_params(params, MU, STD)   # hoisted out of forward

    # (batch, expected tiling) cases:
    #   8    -> single full-dim tile
    #   200  -> single full-dim tile (<= 512)
    #   1000 -> tb=512, 2 tiles, masked partial boundary block
    for batch, kx in ((8, kx1), (200, kx2), (1000, kx3)):
        x = jax.random.normal(kx, (batch, NEURONS[0]), jnp.float32)
        out = network_forward(x, kparams, neurons=NEURONS, acts=ACTS)
        out = jax.block_until_ready(out)
        ref = reference_forward(x, params, NEURONS, ACTS, MU, STD)
        np.testing.assert_allclose(
            np.asarray(out), np.asarray(ref), rtol=1e-5, atol=1e-5
        )

    print("KERNEL_OK")
</pallas_src>

<mosaic_0001>
module attributes {stable_mosaic.version = 11 : i64} {
  func.func @_mlp_kernel(%arg0: i32, %arg1: memref<8x16xf32, #tpu.memory_space<vmem>>, %arg2: memref<32x16xf32, #tpu.memory_space<vmem>>, %arg3: memref<32x1xf32, #tpu.memory_space<vmem>>, %arg4: memref<32x32xf32, #tpu.memory_space<vmem>>, %arg5: memref<32x1xf32, #tpu.memory_space<vmem>>, %arg6: memref<8x32xf32, #tpu.memory_space<vmem>>, %arg7: memref<8x1xf32, #tpu.memory_space<vmem>>, %arg8: memref<8x8xf32, #tpu.memory_space<vmem>>) attributes {dimension_semantics = [#tpu.dimension_semantics<parallel>], iteration_bounds = array<i64: 1>, scalar_prefetch = 0 : i64, scratch_operands = 0 : i64, tpu.core_type = #tpu.core_type<tc>, window_params = [{transform_indices = @transform_0, window_bounds = array<i64: 8, 16>}, {pipeline_mode = #tpu.pipeline_mode<synchronous>, transform_indices = @transform_1, window_bounds = array<i64: 32, 16>}, {pipeline_mode = #tpu.pipeline_mode<synchronous>, transform_indices = @transform_2, window_bounds = array<i64: 32, 1>}, {pipeline_mode = #tpu.pipeline_mode<synchronous>, transform_indices = @transform_3, window_bounds = array<i64: 32, 32>}, {pipeline_mode = #tpu.pipeline_mode<synchronous>, transform_indices = @transform_4, window_bounds = array<i64: 32, 1>}, {pipeline_mode = #tpu.pipeline_mode<synchronous>, transform_indices = @transform_5, window_bounds = array<i64: 8, 32>}, {pipeline_mode = #tpu.pipeline_mode<synchronous>, transform_indices = @transform_6, window_bounds = array<i64: 8, 1>}, {transform_indices = @transform_7, window_bounds = array<i64: 8, 8>}]} {
    %c0 = arith.constant 0 : index
    %c0_0 = arith.constant 0 : index
    %0 = vector.load %arg1[%c0, %c0_0] : memref<8x16xf32, #tpu.memory_space<vmem>>, vector<8x16xf32>
    %c0_1 = arith.constant 0 : index
    %c0_2 = arith.constant 0 : index
    %1 = vector.load %arg2[%c0_1, %c0_2] : memref<32x16xf32, #tpu.memory_space<vmem>>, vector<32x16xf32>
    %c0_3 = arith.constant 0 : index
    %c0_4 = arith.constant 0 : index
    %2 = vector.load %arg3[%c0_3, %c0_4] : memref<32x1xf32, #tpu.memory_space<vmem>>, vector<32x1xf32>
    %cst = arith.constant dense<0.000000e+00> : vector<32x8xf32>
    %3 = tpu.matmul %1, %0, %cst {dimension_numbers = #tpu.dot_dimension_numbers<[1], [1], [0], [0], [0, 0, 1, 0], [], []>} : vector<32x16xf32>, vector<8x16xf32>, vector<32x8xf32> -> vector<32x8xf32>
    %4 = vector.broadcast %2 : vector<32x1xf32> to vector<32x8xf32>
    %5 = arith.addf %3, %4 : vector<32x8xf32>
    %cst_5 = arith.constant 0.000000e+00 : f32
    %6 = vector.broadcast %cst_5 : f32 to vector<32x8xf32>
    %7 = arith.maximumf %5, %6 : vector<32x8xf32>
    %c0_6 = arith.constant 0 : index
    %c0_7 = arith.constant 0 : index
    %8 = vector.load %arg4[%c0_6, %c0_7] : memref<32x32xf32, #tpu.memory_space<vmem>>, vector<32x32xf32>
    %c0_8 = arith.constant 0 : index
    %c0_9 = arith.constant 0 : index
    %9 = vector.load %arg5[%c0_8, %c0_9] : memref<32x1xf32, #tpu.memory_space<vmem>>, vector<32x1xf32>
    %cst_10 = arith.constant dense<0.000000e+00> : vector<32x8xf32>
    %10 = tpu.matmul %8, %7, %cst_10 {dimension_numbers = #tpu.dot_dimension_numbers<[1], [0], [0], [1], [0, 0, 1, 1], [], []>} : vector<32x32xf32>, vector<32x8xf32>, vector<32x8xf32> -> vector<32x8xf32>
    %11 = vector.broadcast %9 : vector<32x1xf32> to vector<32x8xf32>
    %12 = arith.addf %10, %11 : vector<32x8xf32>
    %cst_11 = arith.constant 0.000000e+00 : f32
    %13 = vector.broadcast %cst_11 : f32 to vector<32x8xf32>
    %14 = arith.maximumf %12, %13 : vector<32x8xf32>
    %c0_12 = arith.constant 0 : index
    %c0_13 = arith.constant 0 : index
    %15 = vector.load %arg6[%c0_12, %c0_13] : memref<8x32xf32, #tpu.memory_space<vmem>>, vector<8x32xf32>
    %c0_14 = arith.constant 0 : index
    %c0_15 = arith.constant 0 : index
    %16 = vector.load %arg7[%c0_14, %c0_15] : memref<8x1xf32, #tpu.memory_space<vmem>>, vector<8x1xf32>
    %cst_16 = arith.constant dense<0.000000e+00> : vector<8x8xf32>
    %17 = tpu.matmul %15, %14, %cst_16 {dimension_numbers = #tpu.dot_dimension_numbers<[1], [0], [0], [1], [0, 0, 1, 1], [], []>} : vector<8x32xf32>, vector<32x8xf32>, vector<8x8xf32> -> vector<8x8xf32>
    %18 = vector.broadcast %16 : vector<8x1xf32> to vector<8x8xf32>
    %19 = arith.addf %17, %18 : vector<8x8xf32>
    %c0_17 = arith.constant 0 : index
    %c0_18 = arith.constant 0 : index
    %20 = vector.load %arg8[%c0_17, %c0_18] : memref<8x8xf32, #tpu.memory_space<vmem>>, vector<8x8xf32>
    tpu.vector_store %arg8[%c0_17, %c0_18], %19 {strides = array<i32>} : memref<8x8xf32, #tpu.memory_space<vmem>>, vector<8x8xf32>,
    return
  }
  func.func @transform_0(%arg0: i32) -> (i32, i32) {
    %c0_i32 = arith.constant 0 : i32
    %c0_i32_0 = arith.constant 0 : i32
    return %arg0, %c0_i32 : i32, i32
  }
  func.func @transform_1(%arg0: i32) -> (i32, i32) {
    %c0_i32 = arith.constant 0 : i32
    %c0_i32_0 = arith.constant 0 : i32
    %c0_i32_1 = arith.constant 0 : i32
    return %c0_i32, %c0_i32_0 : i32, i32
  }
  func.func @transform_2(%arg0: i32) -> (i32, i32) {
    %c0_i32 = arith.constant 0 : i32
    %c0_i32_0 = arith.constant 0 : i32
    %c0_i32_1 = arith.constant 0 : i32
    return %c0_i32, %c0_i32_0 : i32, i32
  }
  func.func @transform_3(%arg0: i32) -> (i32, i32) {
    %c0_i32 = arith.constant 0 : i32
    %c0_i32_0 = arith.constant 0 : i32
    %c0_i32_1 = arith.constant 0 : i32
    return %c0_i32, %c0_i32_0 : i32, i32
  }
  func.func @transform_4(%arg0: i32) -> (i32, i32) {
    %c0_i32 = arith.constant 0 : i32
    %c0_i32_0 = arith.constant 0 : i32
    %c0_i32_1 = arith.constant 0 : i32
    return %c0_i32, %c0_i32_0 : i32, i32
  }
  func.func @transform_5(%arg0: i32) -> (i32, i32) {
    %c0_i32 = arith.constant 0 : i32
    %c0_i32_0 = arith.constant 0 : i32
    %c0_i32_1 = arith.constant 0 : i32
    return %c0_i32, %c0_i32_0 : i32, i32
  }
  func.func @transform_6(%arg0: i32) -> (i32, i32) {
    %c0_i32 = arith.constant 0 : i32
    %c0_i32_0 = arith.constant 0 : i32
    %c0_i32_1 = arith.constant 0 : i32
    return %c0_i32, %c0_i32_0 : i32, i32
  }
  func.func @transform_7(%arg0: i32) -> (i32, i32) {
    %c0_i32 = arith.constant 0 : i32
    %c0_i32_0 = arith.constant 0 : i32
    return %c0_i32, %arg0 : i32, i32
  }
}

</mosaic_0001>

<llo_original>
// kernel: network_forward.1
$region0: #{network_forward.1}
  #allocation0 [shape = 'u32[]', space=smem, size = 0x4, offset = 0x4, fixed_abs, tag = 'smem constant byte address 0x4 - core index']
  #allocation1 [shape = 'u32[144,128]{1,0:T(1,128)}', space=vmem, size = 0x12000, scoped, tag = 'internal scratch']
  %s0 = inlined_call_operand.vmem [shape: f32[8,16], index: 0, kind: input, shape index: {}]
  %s1 = inlined_call_operand.vmem [shape: f32[32,16], index: 1, kind: input, shape index: {}]
  %s2 = inlined_call_operand.vmem [shape: f32[32,1], index: 2, kind: input, shape index: {}]
  %s3 = inlined_call_operand.vmem [shape: f32[32,32], index: 3, kind: input, shape index: {}]
  %s4 = inlined_call_operand.vmem [shape: f32[32,1], index: 4, kind: input, shape index: {}]
  %s5 = inlined_call_operand.vmem [shape: f32[8,32], index: 5, kind: input, shape index: {}]
  %s6 = inlined_call_operand.vmem [shape: f32[8,1], index: 6, kind: input, shape index: {}]
  %s7 = inlined_call_operand.vmem [shape: f32[8,8], index: 7, kind: output, shape index: {}]
  %s8 = sld [smem:[#allocation0]]
  $region38: #{network_forward.1} parent=0
    _
  %s10 = ssub.s32 1, %s8
  %s11 = scalar_select 0, %s10, %s8
  // Predicated region
  $region2: #{network_forward.1} parent=0 // pred_check
    _
  $region3: #{network_forward.1} parent=0 // pred_check_branch
    %13 = sbr.rel (0) target = $region5
  $region4: #{network_forward.1} parent=0 // pred_region
    _
  $region5: #{network_forward.1} parent=0 // pred_fallthru
    _
  // Predicated region
  $region6: #{network_forward.1} parent=0 // pred_check
    _
  $region7: #{network_forward.1} parent=0 // pred_check_branch
    %15 = sbr.rel (0) target = $region9
  $region8: #{network_forward.1} parent=0 // pred_region
    _
  $region9: #{network_forward.1} parent=0 // pred_fallthru
    _
  // Predicated region
  $region10: #{network_forward.1} parent=0 // pred_check
    _
  $region11: #{network_forward.1} parent=0 // pred_check_branch
    %17 = sbr.rel (0) target = $region13
  $region12: #{network_forward.1} parent=0 // pred_region
    _
  $region13: #{network_forward.1} parent=0 // pred_fallthru
    _
  // Predicated region
  $region14: #{network_forward.1} parent=0 // pred_check
    _
  $region15: #{network_forward.1} parent=0 // pred_check_branch
    %19 = sbr.rel (0) target = $region17
  $region16: #{network_forward.1} parent=0 // pred_region
    _
  $region17: #{network_forward.1} parent=0 // pred_fallthru
    _
  // Predicated region
  $region18: #{network_forward.1} parent=0 // pred_check
    _
  $region19: #{network_forward.1} parent=0 // pred_check_branch
    %21 = sbr.rel (0) target = $region21
  $region20: #{network_forward.1} parent=0 // pred_region
    _
  $region21: #{network_forward.1} parent=0 // pred_fallthru
    _
  // Predicated region
  $region22: #{network_forward.1} parent=0 // pred_check
    _
  $region23: #{network_forward.1} parent=0 // pred_check_branch
    %23 = sbr.rel (0) target = $region25
  $region24: #{network_forward.1} parent=0 // pred_region
    _
  $region25: #{network_forward.1} parent=0 // pred_fallthru
    _
  // Predicated region
  $region26: #{network_forward.1} parent=0 // pred_check
    _
  $region27: #{network_forward.1} parent=0 // pred_check_branch
    %25 = sbr.rel (0) target = $region29
  $region28: #{network_forward.1} parent=0 // pred_region
    _
  $region29: #{network_forward.1} parent=0 // pred_fallthru
    _
  %v26 = vld [vmem:[%s0] sm:$0xff]
  %v27 = vld [vmem:[%s1] sm:$0xff]
  %v28 = vld [vmem:[%s1 + $0x8] sm:$0xff]
  %v29 = vld [vmem:[%s1 + $0x10] sm:$0xff]
  %v30 = vld [vmem:[%s1 + $0x18] sm:$0xff]
  %v31 = vld [vmem:[%s2] sm:$0xff]
  %v32 = vld [vmem:[%s2 + $0x8] sm:$0xff]
  %v33 = vld [vmem:[%s2 + $0x10] sm:$0xff]
  %v34 = vld [vmem:[%s2 + $0x18] sm:$0xff]
  %36 = vset.pattern.permute.xlu0 0
  %37 = vperm.xlu0 %36, %v31
  %v38 = vpop.permute.xlu0 %37
  %41 = vset.pattern.permute.xlu0 0
  %42 = vperm.xlu0 %41, %v32
  %v43 = vpop.permute.xlu0 %42
  %46 = vset.pattern.permute.xlu0 0
  %47 = vperm.xlu0 %46, %v33
  %v48 = vpop.permute.xlu0 %47
  %51 = vset.pattern.permute.xlu0 0
  %52 = vperm.xlu0 %51, %v34
  %v53 = vpop.permute.xlu0 %52
  %vm55 = vcmask 130048
  %v57 = vsel %vm55, %v27, 0
  %v60 = vsel %vm55, %v28, 0
  %v63 = vsel %vm55, %v29, 0
  %v66 = vsel %vm55, %v30, 0
  %v69 = vsel %vm55, %v26, 0
  %71 = vmatprep.subr.mxu0 0.0
  %72 = vmatpush1.xpose.msra.mxu0 0.0
  %73 = vmatprep.subr.mxu0 0.0
  %74 = vmatpush1.xpose.msra.mxu0 0.0
  %75 = vmatprep.subr.mxu0 0.0
  %76 = vmatpush1.xpose.msra.mxu0 0.0
  %77 = vmatprep.subr.mxu0 0.0
  %78 = vmatpush1.xpose.msra.mxu0 0.0
  %79 = vmatprep.subr.mxu0 0.0
  %80 = vmatpush1.xpose.msra.mxu0 0.0
  %81 = vmatprep.subr.mxu0 0.0
  %82 = vmatpush1.xpose.msra.mxu0 0.0
  %83 = vmatprep.subr.mxu0 0.0
  %84 = vmatpush1.xpose.msra.mxu0 0.0
  %85 = vmatprep.subr.mxu0 0.0
  %86 = vmatpush1.xpose.msra.mxu0 0.0
  %87 = vmatprep.subr.mxu0 0.0
  %88 = vmatpush1.xpose.msra.mxu0 0.0
  %89 = vmatprep.subr.mxu0 0.0
  %90 = vmatpush1.xpose.msra.mxu0 0.0
  %91 = vmatprep.subr.mxu0 0.0
  %92 = vmatpush1.xpose.msra.mxu0 0.0
  %93 = vmatprep.subr.mxu0 0.0
  %94 = vmatpush1.xpose.msra.mxu0 0.0
  %95 = vmatprep.subr.mxu0 0.0
  %96 = vmatpush1.xpose.msra.mxu0 0.0
  %97 = vmatprep.subr.mxu0 0.0
  %98 = vmatpush1.xpose.msra.mxu0 0.0
  %99 = vmatprep.subr.mxu0 0.0
  %100 = vmatpush1.xpose.msra.mxu0 0.0
  %101 = vmatprep.subr.mxu0 0.0
  %102 = vmatpush1.xpose.msra.mxu0 %v69
  %103 = vmatprep.subr.mxu0 0.0
  %104 = vmatpush2.xpose.msra.mxu0 0.0
  %105 = vmatprep.subr.mxu0 0.0
  %106 = vmatpush2.xpose.msra.mxu0 0.0
  %107 = vmatprep.subr.mxu0 0.0
  %108 = vmatpush2.xpose.msra.mxu0 0.0
  %109 = vmatprep.subr.mxu0 0.0
  %110 = vmatpush2.xpose.msra.mxu0 0.0
  %111 = vmatprep.subr.mxu0 0.0
  %112 = vmatpush2.xpose.msra.mxu0 0.0
  %113 = vmatprep.subr.mxu0 0.0
  %114 = vmatpush2.xpose.msra.mxu0 0.0
  %115 = vmatprep.subr.mxu0 0.0
  %116 = vmatpush2.xpose.msra.mxu0 0.0
  %117 = vmatprep.subr.mxu0 0.0
  %118 = vmatpush2.xpose.msra.mxu0 0.0
  %119 = vmatprep.subr.mxu0 0.0
  %120 = vmatpush2.xpose.msra.mxu0 0.0
  %121 = vmatprep.subr.mxu0 0.0
  %122 = vmatpush2.xpose.msra.mxu0 0.0
  %123 = vmatprep.subr.mxu0 0.0
  %124 = vmatpush2.xpose.msra.mxu0 0.0
  %125 = vmatprep.subr.mxu0 0.0
  %126 = vmatpush2.xpose.msra.mxu0 0.0
  %127 = vmatprep.subr.mxu0 0.0
  %128 = vmatpush2.xpose.msra.mxu0 0.0
  %129 = vmatprep.subr.mxu0 0.0
  %130 = vmatpush2.xpose.msra.mxu0 0.0
  %131 = vmatprep.subr.mxu0 0.0
  %132 = vmatpush2.xpose.msra.mxu0 0.0
  %133 = vmatprep.subr.mxu0 0.0
  %134 = vmatpush2.xpose.msra.mxu0 0.0
  %135 = vmatprep.mubr.f32.mxu0 0.0
  %136 = vmatmul.mubr.f32.gmra.mxu0 %v57
  %v137 = vpop.f32.mrf.mxu0
  %v138 = vadd.f32 %v38, %v137
  %v139 = vpop.f32.mrf.mxu0
  %140 = vmatprep.mubr.f32.mxu0 0.0
  %141 = vmatmul.mubr.f32.gmra.mxu0 %v60
  %v142 = vpop.f32.mrf.mxu0
  %v143 = vadd.f32 %v43, %v142
  %v144 = vpop.f32.mrf.mxu0
  %145 = vmatprep.mubr.f32.mxu0 0.0
  %146 = vmatmul.mubr.f32.gmra.mxu0 %v63
  %v147 = vpop.f32.mrf.mxu0
  %v148 = vadd.f32 %v48, %v147
  %v149 = vpop.f32.mrf.mxu0
  %150 = vmatprep.mubr.f32.mxu0 0.0
  %151 = vmatmul.mubr.f32.gmra.mxu0 %v66
  %v152 = vpop.f32.mrf.mxu0
  %v153 = vadd.f32 %v53, %v152
  %v154 = vpop.f32.mrf.mxu0
  %155 = vdwg.mxu0
  %v156 = vmax.f32 %v138, 0.0
  %v157 = vmax.f32 %v143, 0.0
  %v158 = vmax.f32 %v148, 0.0
  %v159 = vmax.f32 %v153, 0.0
  %v160 = vld [vmem:[%s3] sm:$0xff]
  %v161 = vld [vmem:[%s3 + $0x8] sm:$0xff]
  %v162 = vld [vmem:[%s3 + $0x10] sm:$0xff]
  %v163 = vld [vmem:[%s3 + $0x18] sm:$0xff]
  %v164 = vld [vmem:[%s4] sm:$0xff]
  %v165 = vld [vmem:[%s4 + $0x8] sm:$0xff]
  %v166 = vld [vmem:[%s4 + $0x10] sm:$0xff]
  %v167 = vld [vmem:[%s4 + $0x18] sm:$0xff]
  %169 = vset.pattern.permute.xlu0 0
  %170 = vperm.xlu0 %169, %v164
  %v171 = vpop.permute.xlu0 %170
  %174 = vset.pattern.permute.xlu0 0
  %175 = vperm.xlu0 %174, %v165
  %v176 = vpop.permute.xlu0 %175
  %179 = vset.pattern.permute.xlu0 0
  %180 = vperm.xlu0 %179, %v166
  %v181 = vpop.permute.xlu0 %180
  %184 = vset.pattern.permute.xlu0 0
  %185 = vperm.xlu0 %184, %v167
  %v186 = vpop.permute.xlu0 %185
  %vm188 = vcmask 261120
  %v190 = vsel %vm188, %v160, 0
  %v193 = vsel %vm188, %v161, 0
  %v196 = vsel %vm188, %v162, 0
  %v199 = vsel %vm188, %v163, 0
  %201 = vmatprep.subr.mxu0 0.0
  %202 = vmatpush1.msra.mxu0 0.0
  %203 = vmatprep.subr.mxu0 0.0
  %204 = vmatpush1.msra.mxu0 0.0
  %205 = vmatprep.subr.mxu0 0.0
  %206 = vmatpush1.msra.mxu0 0.0
  %207 = vmatprep.subr.mxu0 0.0
  %208 = vmatpush1.msra.mxu0 0.0
  %209 = vmatprep.subr.mxu0 0.0
  %210 = vmatpush1.msra.mxu0 0.0
  %211 = vmatprep.subr.mxu0 0.0
  %212 = vmatpush1.msra.mxu0 0.0
  %213 = vmatprep.subr.mxu0 0.0
  %214 = vmatpush1.msra.mxu0 0.0
  %215 = vmatprep.subr.mxu0 0.0
  %216 = vmatpush1.msra.mxu0 0.0
  %217 = vmatprep.subr.mxu0 0.0
  %218 = vmatpush1.msra.mxu0 0.0
  %219 = vmatprep.subr.mxu0 0.0
  %220 = vmatpush1.msra.mxu0 0.0
  %221 = vmatprep.subr.mxu0 0.0
  %222 = vmatpush1.msra.mxu0 0.0
  %223 = vmatprep.subr.mxu0 0.0
  %224 = vmatpush1.msra.mxu0 0.0
  %225 = vmatprep.subr.mxu0 0.0
  %226 = vmatpush1.msra.mxu0 %v159
  %227 = vmatprep.subr.mxu0 0.0
  %228 = vmatpush1.msra.mxu0 %v158
  %229 = vmatprep.subr.mxu0 0.0
  %230 = vmatpush1.msra.mxu0 %v157
  %231 = vmatprep.subr.mxu0 0.0
  %232 = vmatpush1.msra.mxu0 %v156
  %233 = vmatprep.subr.mxu0 0.0
  %234 = vmatpush2.msra.mxu0 0.0
  %235 = vmatprep.subr.mxu0 0.0
  %236 = vmatpush2.msra.mxu0 0.0
  %237 = vmatprep.subr.mxu0 0.0
  %238 = vmatpush2.msra.mxu0 0.0
  %239 = vmatprep.subr.mxu0 0.0
  %240 = vmatpush2.msra.mxu0 0.0
  %241 = vmatprep.subr.mxu0 0.0
  %242 = vmatpush2.msra.mxu0 0.0
  %243 = vmatprep.subr.mxu0 0.0
  %244 = vmatpush2.msra.mxu0 0.0
  %245 = vmatprep.subr.mxu0 0.0
  %246 = vmatpush2.msra.mxu0 0.0
  %247 = vmatprep.subr.mxu0 0.0
  %248 = vmatpush2.msra.mxu0 0.0
  %249 = vmatprep.subr.mxu0 0.0
  %250 = vmatpush2.msra.mxu0 0.0
  %251 = vmatprep.subr.mxu0 0.0
  %252 = vmatpush2.msra.mxu0 0.0
  %253 = vmatprep.subr.mxu0 0.0
  %254 = vmatpush2.msra.mxu0 0.0
  %255 = vmatprep.subr.mxu0 0.0
  %256 = vmatpush2.msra.mxu0 0.0
  %257 = vmatprep.subr.mxu0 0.0
  %258 = vmatpush2.msra.mxu0 0.0
  %259 = vmatprep.subr.mxu0 0.0
  %260 = vmatpush2.msra.mxu0 0.0
  %261 = vmatprep.subr.mxu0 0.0
  %262 = vmatpush2.msra.mxu0 0.0
  %263 = vmatprep.subr.mxu0 0.0
  %264 = vmatpush2.msra.mxu0 0.0
  %265 = vmatprep.mubr.f32.mxu0 0.0
  %266 = vmatmul.mubr.f32.gmra.mxu0 %v190
  %v267 = vpop.f32.mrf.mxu0
  %v268 = vadd.f32 %v171, %v267
  %v269 = vpop.f32.mrf.mxu0
  %270 = vmatprep.mubr.f32.mxu0 0.0
  %271 = vmatmul.mubr.f32.gmra.mxu0 %v193
  %v272 = vpop.f32.mrf.mxu0
  %v273 = vadd.f32 %v176, %v272
  %v274 = vpop.f32.mrf.mxu0
  %275 = vmatprep.mubr.f32.mxu0 0.0
  %276 = vmatmul.mubr.f32.gmra.mxu0 %v196
  %v277 = vpop.f32.mrf.mxu0
  %v278 = vadd.f32 %v181, %v277
  %v279 = vpop.f32.mrf.mxu0
  %280 = vmatprep.mubr.f32.mxu0 0.0
  %281 = vmatmul.mubr.f32.gmra.mxu0 %v199
  %v282 = vpop.f32.mrf.mxu0
  %v283 = vadd.f32 %v186, %v282
  %v284 = vpop.f32.mrf.mxu0
  %285 = vdwg.mxu0
  %v286 = vmax.f32 %v268, 0.0
  %v287 = vmax.f32 %v273, 0.0
  %v288 = vmax.f32 %v278, 0.0
  %v289 = vmax.f32 %v283, 0.0
  %v290 = vld [vmem:[%s5] sm:$0xff]
  %v291 = vld [vmem:[%s6] sm:$0xff]
  %293 = vset.pattern.permute.xlu0 0
  %294 = vperm.xlu0 %293, %v291
  %v295 = vpop.permute.xlu0 %294
  %v298 = vsel %vm188, %v290, 0
  %300 = vmatprep.subr.mxu0 0.0
  %301 = vmatpush1.msra.mxu0 0.0
  %302 = vmatprep.subr.mxu0 0.0
  %303 = vmatpush1.msra.mxu0 0.0
  %304 = vmatprep.subr.mxu0 0.0
  %305 = vmatpush1.msra.mxu0 0.0
  %306 = vmatprep.subr.mxu0 0.0
  %307 = vmatpush1.msra.mxu0 0.0
  %308 = vmatprep.subr.mxu0 0.0
  %309 = vmatpush1.msra.mxu0 0.0
  %310 = vmatprep.subr.mxu0 0.0
  %311 = vmatpush1.msra.mxu0 0.0
  %312 = vmatprep.subr.mxu0 0.0
  %313 = vmatpush1.msra.mxu0 0.0
  %314 = vmatprep.subr.mxu0 0.0
  %315 = vmatpush1.msra.mxu0 0.0
  %316 = vmatprep.subr.mxu0 0.0
  %317 = vmatpush1.msra.mxu0 0.0
  %318 = vmatprep.subr.mxu0 0.0
  %319 = vmatpush1.msra.mxu0 0.0
  %320 = vmatprep.subr.mxu0 0.0
  %321 = vmatpush1.msra.mxu0 0.0
  %322 = vmatprep.subr.mxu0 0.0
  %323 = vmatpush1.msra.mxu0 0.0
  %324 = vmatprep.subr.mxu0 0.0
  %325 = vmatpush1.msra.mxu0 %v289
  %326 = vmatprep.subr.mxu0 0.0
  %327 = vmatpush1.msra.mxu0 %v288
  %328 = vmatprep.subr.mxu0 0.0
  %329 = vmatpush1.msra.mxu0 %v287
  %330 = vmatprep.subr.mxu0 0.0
  %331 = vmatpush1.msra.mxu0 %v286
  %332 = vmatprep.subr.mxu0 0.0
  %333 = vmatpush2.msra.mxu0 0.0
  %334 = vmatprep.subr.mxu0 0.0
  %335 = vmatpush2.msra.mxu0 0.0
  %336 = vmatprep.subr.mxu0 0.0
  %337 = vmatpush2.msra.mxu0 0.0
  %338 = vmatprep.subr.mxu0 0.0
  %339 = vmatpush2.msra.mxu0 0.0
  %340 = vmatprep.subr.mxu0 0.0
  %341 = vmatpush2.msra.mxu0 0.0
  %342 = vmatprep.subr.mxu0 0.0
  %343 = vmatpush2.msra.mxu0 0.0
  %344 = vmatprep.subr.mxu0 0.0
  %345 = vmatpush2.msra.mxu0 0.0
  %346 = vmatprep.subr.mxu0 0.0
  %347 = vmatpush2.msra.mxu0 0.0
  %348 = vmatprep.subr.mxu0 0.0
  %349 = vmatpush2.msra.mxu0 0.0
  %350 = vmatprep.subr.mxu0 0.0
  %351 = vmatpush2.msra.mxu0 0.0
  %352 = vmatprep.subr.mxu0 0.0
  %353 = vmatpush2.msra.mxu0 0.0
  %354 = vmatprep.subr.mxu0 0.0
  %355 = vmatpush2.msra.mxu0 0.0
  %356 = vmatprep.subr.mxu0 0.0
  %357 = vmatpush2.msra.mxu0 0.0
  %358 = vmatprep.subr.mxu0 0.0
  %359 = vmatpush2.msra.mxu0 0.0
  %360 = vmatprep.subr.mxu0 0.0
  %361 = vmatpush2.msra.mxu0 0.0
  %362 = vmatprep.subr.mxu0 0.0
  %363 = vmatpush2.msra.mxu0 0.0
  %364 = vmatprep.mubr.f32.mxu0 0.0
  %365 = vmatmul.mubr.f32.gmra.mxu0 %v298
  %v366 = vpop.f32.mrf.mxu0
  %v367 = vadd.f32 %v295, %v366
  %v368 = vpop.f32.mrf.mxu0
  %369 = vdwg.mxu0
  %vm370 = vcmask 64512
  %371 = vst.msk [vmem:[%s7] sm:$0xff] %vm370, %v367
  // Predicated region
  $region30: #{network_forward.1} parent=0 // pred_check
    _
  $region31: #{network_forward.1} parent=0 // pred_check_branch
    %373 = sbr.rel (0) target = $region33
  $region32: #{network_forward.1} parent=0 // pred_region
    _
  $region33: #{network_forward.1} parent=0 // pred_fallthru
    _
  // Predicated region
  $region34: #{network_forward.1} parent=0 // pred_check
    _
  $region35: #{network_forward.1} parent=0 // pred_check_branch
    %375 = sbr.rel (0) target = $region37
  $region36: #{network_forward.1} parent=0 // pred_region
    _
  $region37: #{network_forward.1} parent=0 // pred_fallthru
    _

</llo_original>
